<compile_context>
chip_gen: v7x
topology: tpu7x:2x2x1
jax: 0.10.0
libtpu: 0.0.40
codegen_flags: <defaults>
</compile_context>

<pallas_src>
import jax
import jax.numpy as jnp
import numpy as np
from jax import lax
from jax.experimental import pallas as pl
from jax.experimental.pallas import tpu as pltpu

LANE = 128
SUBLANE = 8


def _vmem_capacity_bytes():
    """Per-core VMEM capacity; conservative 64 MiB (v7x) fallback if unknown."""
    try:
        return max(32 * 1024 * 1024, int(pltpu.get_tpu_info().vmem_capacity_bytes))
    except Exception:
        return 64 * 1024 * 1024


def _make_sq_kernel(tile_r, total_rows, needs_mask):
    """Streaming per-group sum-of-squares over (tile_r, 128) row stripes."""

    def kernel(g_ref, sq_ref):
        r = pl.program_id(1)
        last = pl.num_programs(1) - 1

        @pl.when(r == 0)
        def _():
            sq_ref[...] = jnp.zeros_like(sq_ref)

        def accumulate(mask_tail):
            g = g_ref[...].astype(jnp.float32)                  # (tile_r, 128)
            if mask_tail:
                # Row indices are in units of 128 lanes, so int32 is safe for
                # any realistic shared-parameter count (< ~2.7e11 params).
                row = lax.broadcasted_iota(jnp.int32, (tile_r, LANE), 0)
                g = jnp.where(r * tile_r + row < total_rows, g, 0.0)
            gsq = g * g
            # Fold the row-block axis with vreg-wise VALU adds only; the
            # cross-lane / cross-sublane reduction happens in the epilogue.
            sq_ref[...] += jnp.sum(
                gsq.reshape(tile_r // SUBLANE, SUBLANE, LANE),
                axis=0, keepdims=True)

        if needs_mask:
            # Only the final row tile can be partial; keep the steady state
            # free of iota/compare/select work.
            pl.when(r == last)(lambda: accumulate(True))
            pl.when(r != last)(lambda: accumulate(False))
        else:
            accumulate(False)

    return kernel


def _make_epilogue_kernel(num, alpha):
    """O(num) GradNorm epilogue on (num, 1) column vectors."""

    def kernel(w_ref, gl_ref, l0_ref, sq_ref, lt_ref, lg_ref, w_out_ref):
        w = w_ref[...]                                          # (num, 1)
        gl = gl_ref[...]
        l0 = l0_ref[...]

        # Per-group sum of squares: reduce lanes, then sublanes.
        sq = jnp.sum(sq_ref[...], axis=2)                       # (num, 8)
        sq = jnp.sum(sq, axis=1, keepdims=True)                 # (num, 1)

        # self.weight.data = num * self.weight / sum(self.weight)
        w_sum = jnp.sum(w, axis=0, keepdims=True)               # (1, 1)
        w_norm = (num * w) / w_sum
        w_out_ref[...] = w_norm

        # loss_total = sum_g w[g] * group_loss[g]
        lt_ref[...] = jnp.sum(w_norm * gl, axis=0, keepdims=True)

        # g_dict[g] = || w[g] * grad_g ||_2 = |w[g]| * sqrt(sum(grad_g^2))
        gnorm = jnp.abs(w_norm) * jnp.sqrt(sq)                  # (num, 1)
        g_ave = jnp.sum(gnorm, axis=0, keepdims=True) / num

        # inverse training rates and GradNorm targets
        l_hat = gl / l0
        l_hat_ave = jnp.sum(l_hat, axis=0, keepdims=True) / num
        inv_r = l_hat / l_hat_ave
        # inv_r ** alpha == exp(alpha * log(inv_r)); NaN for inv_r <= 0, which
        # matches torch.pow semantics with a float exponent.
        tar = g_ave * jnp.exp(alpha * jnp.log(inv_r))

        # loss_grad = sum_g |g_dict[g] - tar[g]|   (L1Loss on scalars)
        lg_ref[...] = jnp.sum(jnp.abs(gnorm - tar), axis=0, keepdims=True)

    return kernel


def gradnorm_weight_loss(weight, group_losses, loss_0, grads, *, alpha):
    """weight: (num,), group_losses: (num,), loss_0: (num,), grads: (num, P).

    Returns (loss_total, loss_grad, normalized_weight) matching the PyTorch
    module's forward return values."""
    num, P = grads.shape
    itemsize = jnp.dtype(grads.dtype).itemsize

    # --- sublane-dense (num, R, 128) layout of the flattened shared params ---
    R = pl.cdiv(P, LANE)
    if P != R * LANE:
        # TODO(synk): have the caller emit 128-aligned flattened grads so this
        # one-time HBM pad copy disappears.
        grads = jnp.pad(grads, ((0, 0), (0, R * LANE - P)))
    grads3 = grads.reshape(num, R, LANE)       # free reshape when P % 128 == 0

    # --- row-tile size from the device VMEM budget ----------------------------
    capacity = _vmem_capacity_bytes()
    budget_f32 = min(8 * 1024 * 1024, capacity // 12)    # f32 working set/block
    row_align = max(SUBLANE, 32 // itemsize)              # packed-dtype sublanes
    tile_r = max(row_align,
                 (budget_f32 // (LANE * 4)) // row_align * row_align)
    tile_r = min(tile_r, pl.cdiv(R, row_align) * row_align)
    grid_r = pl.cdiv(R, tile_r)
    needs_mask = (R % tile_r) != 0

    # Streaming per-group sum-of-squares. The group axis is "parallel" so v7x
    # shards independent groups across both TensorCores.
    # TODO(synk): for num == 1, a row-split parallel axis with per-core partial
    # sums would be needed to use both v7x cores.
    sq_acc = pl.pallas_call(
        _make_sq_kernel(tile_r, R, needs_mask),
        out_shape=jax.ShapeDtypeStruct((num, SUBLANE, LANE), jnp.float32),
        grid_spec=pltpu.PrefetchScalarGridSpec(
            num_scalar_prefetch=0,
            grid=(num, grid_r),
            in_specs=[pl.BlockSpec((None, tile_r, LANE),
                                   lambda g, r: (g, r, 0))],
            out_specs=pl.BlockSpec((1, SUBLANE, LANE),
                                   lambda g, r: (g, 0, 0))),
        compiler_params=pltpu.CompilerParams(
            dimension_semantics=("parallel", "arbitrary"),
            vmem_limit_bytes=max(32 * 1024 * 1024, capacity // 2)),
    )(grads3)

    w = weight.astype(jnp.float32).reshape(num, 1)
    gl = group_losses.astype(jnp.float32).reshape(num, 1)
    l0 = loss_0.astype(jnp.float32).reshape(num, 1)

    lt, lg, w_out = pl.pallas_call(
        _make_epilogue_kernel(num, float(alpha)),
        out_shape=(jax.ShapeDtypeStruct((1, 1), jnp.float32),
                   jax.ShapeDtypeStruct((1, 1), jnp.float32),
                   jax.ShapeDtypeStruct((num, 1), jnp.float32)),
    )(w, gl, l0, sq_acc)

    return lt[0, 0], lg[0, 0], w_out[:, 0]


if __name__ == "__main__":
    key = jax.random.PRNGKey(0)
    k1, _ = jax.random.split(key)

    # synthetic multi-task setup mirroring GradNormWeightLoss.__init__
    group_idx = {"det": 0, "seg": 1}
    groups = {"det": ["hm", "wh"], "seg": ["mask"]}
    num = len(group_idx)
    alpha = 1.5      # opt.gradnorm_alpha
    epoch = 1

    # shared backbone parameter that all task losses depend on
    param = jax.random.normal(k1, (8, 128), jnp.float32)   # 1024 shared params
    head_coeff = {"hm": 0.7, "wh": 0.3, "mask": 1.1}

    def head_loss(p, h):
        c = head_coeff[h]
        if h == "hm":
            return c * jnp.mean(p * p)
        if h == "wh":
            return c * jnp.mean(jnp.abs(p))
        return c * jnp.mean(jnp.tanh(p) ** 2)

    def group_loss_fn(p, g):
        return sum(head_loss(p, h) for h in groups[g])

    ordered_groups = sorted(group_idx, key=lambda g: group_idx[g])
    gl_list, grad_list = [], []
    for g in ordered_groups:
        val, gr = jax.value_and_grad(group_loss_fn)(param, g)
        gl_list.append(val)
        grad_list.append(gr.reshape(-1))
    group_losses = jnp.stack(gl_list)        # (num,)
    grads = jnp.stack(grad_list)             # (num, 1024), native dtype

    # nn.Parameter(torch.ones(num)) init; loss_0 captured at epoch 1
    weight = jnp.ones((num,), jnp.float32)
    loss_0 = group_losses                    # epoch == 1 path

    # pure-JAX reference of the PyTorch forward
    w_ref = num * weight / jnp.sum(weight)
    loss_total_ref = jnp.sum(w_ref * group_losses)
    gnorm_ref = jnp.abs(w_ref) * jnp.sqrt(jnp.sum(grads * grads, axis=1))
    g_ave_ref = jnp.mean(gnorm_ref)
    l_hat_ref = group_losses / loss_0
    inv_r_ref = l_hat_ref / jnp.mean(l_hat_ref)
    tar_ref = g_ave_ref * inv_r_ref ** alpha
    loss_grad_ref = jnp.sum(jnp.abs(gnorm_ref - tar_ref))

    lt, lg, w_out = gradnorm_weight_loss(weight, group_losses, loss_0, grads,
                                         alpha=alpha)
    jax.block_until_ready((lt, lg, w_out))

    np.testing.assert_allclose(np.asarray(lt), np.asarray(loss_total_ref),
                               rtol=1e-3, atol=1e-4)
    np.testing.assert_allclose(np.asarray(lg), np.asarray(loss_grad_ref),
                               rtol=1e-3, atol=1e-4)
    np.testing.assert_allclose(np.asarray(w_out), np.asarray(w_ref),
                               rtol=1e-3, atol=1e-5)
    print("KERNEL_OK")
</pallas_src>

<mosaic_0001>
module attributes {stable_mosaic.version = 11 : i64} {
  func.func @kernel(%arg0: i32, %arg1: i32, %arg2: memref<1x8x128xf32, #tpu.memory_space<vmem>>, %arg3: memref<1x8x128xf32, #tpu.memory_space<vmem>>) attributes {dimension_semantics = [#tpu.dimension_semantics<parallel>, #tpu.dimension_semantics<arbitrary>], iteration_bounds = array<i64: 2, 1>, scalar_prefetch = 0 : i64, scratch_operands = 0 : i64, tpu.core_type = #tpu.core_type<tc>, window_params = [{transform_indices = @transform_0, window_bounds = array<i64: 1, 8, 128>}, {transform_indices = @transform_1, window_bounds = array<i64: 1, 8, 128>}]} {
    %c0_i32 = arith.constant 0 : i32
    %0 = arith.cmpi eq, %arg1, %c0_i32 : i32
    %1 = arith.extui %0 : i1 to i32
    %c0_i32_0 = arith.constant 0 : i32
    %2 = arith.cmpi ne, %1, %c0_i32_0 : i32
    scf.if %2 {
      %cst_9 = arith.constant 0.000000e+00 : f32
      %12 = vector.broadcast %cst_9 : f32 to vector<1x8x128xf32>
      %c0_10 = arith.constant 0 : index
      %c0_11 = arith.constant 0 : index
      %c0_12 = arith.constant 0 : index
      %13 = vector.load %arg3[%c0_10, %c0_11, %c0_12] : memref<1x8x128xf32, #tpu.memory_space<vmem>>, vector<1x8x128xf32>
      tpu.vector_store %arg3[%c0_10, %c0_11, %c0_12], %12 {strides = array<i32>} : memref<1x8x128xf32, #tpu.memory_space<vmem>>, vector<1x8x128xf32>,
    } else {
    }
    %c0 = arith.constant 0 : index
    %c0_1 = arith.constant 0 : index
    %c0_2 = arith.constant 0 : index
    %3 = vector.load %arg2[%c0, %c0_1, %c0_2] : memref<1x8x128xf32, #tpu.memory_space<vmem>>, vector<1x8x128xf32>
    %4 = vector.shape_cast %3 : vector<1x8x128xf32> to vector<8x128xf32>
    %5 = arith.mulf %4, %4 : vector<8x128xf32>
    %c0_3 = arith.constant 0 : index
    %c0_4 = arith.constant 0 : index
    %c0_5 = arith.constant 0 : index
    %6 = vector.load %arg3[%c0_3, %c0_4, %c0_5] : memref<1x8x128xf32, #tpu.memory_space<vmem>>, vector<1x8x128xf32>
    %7 = vector.shape_cast %5 : vector<8x128xf32> to vector<1x8x128xf32>
    %cst = arith.constant dense<0.000000e+00> : vector<8x128xf32>
    %8 = vector.multi_reduction <add>, %7, %cst [0] : vector<1x8x128xf32> to vector<8x128xf32>
    %9 = vector.shape_cast %8 : vector<8x128xf32> to vector<1x8x128xf32>
    %10 = arith.addf %6, %9 : vector<1x8x128xf32>
    %c0_6 = arith.constant 0 : index
    %c0_7 = arith.constant 0 : index
    %c0_8 = arith.constant 0 : index
    %11 = vector.load %arg3[%c0_6, %c0_7, %c0_8] : memref<1x8x128xf32, #tpu.memory_space<vmem>>, vector<1x8x128xf32>
    tpu.vector_store %arg3[%c0_6, %c0_7, %c0_8], %10 {strides = array<i32>} : memref<1x8x128xf32, #tpu.memory_space<vmem>>, vector<1x8x128xf32>,
    return
  }
  func.func @transform_0(%arg0: i32, %arg1: i32) -> (i32, i32, i32) {
    %c0_i32 = arith.constant 0 : i32
    %c0_i32_0 = arith.constant 0 : i32
    return %arg0, %arg1, %c0_i32 : i32, i32, i32
  }
  func.func @transform_1(%arg0: i32, %arg1: i32) -> (i32, i32, i32) {
    %c0_i32 = arith.constant 0 : i32
    %c0_i32_0 = arith.constant 0 : i32
    %c0_i32_1 = arith.constant 0 : i32
    return %arg0, %c0_i32, %c0_i32_0 : i32, i32, i32
  }
}

</mosaic_0001>

<llo_original>
// kernel: tpu_custom_call.1
$region0: #{tpu_custom_call.1}
  #allocation0 [shape = 'u32[]', space=smem, size = 0x4, offset = 0x4, fixed_abs, tag = 'smem constant byte address 0x4 - core index']
  #allocation1 [shape = 'u32[144,128]{1,0:T(1,128)}', space=vmem, size = 0x12000, scoped, tag = 'internal scratch']
  %s0 = inlined_call_operand.hbm [shape: f32[2,8,128], index: 0, kind: input, shape index: {}]
  %s1 = inlined_call_operand.hbm [shape: f32[2,8,128], index: 1, kind: output, shape index: {}]
  %s2 = sld [smem:[#allocation0]]
  $region45: #{tpu_custom_call.1} parent=0
    _
  %s4 = ssub.s32 1, %s2
  %s5 = scalar_select 0, %s4, %s2
  $region1: #{tpu_custom_call.1} parent=0
    #allocation2 [shape = 'u8[8192]{0}', space=vmem, size = 0x2000, scoped, tag = 'input window, operand 0']
    #allocation3 [shape = 's32[2]{0}', space=sflag, size = 0x8, scoped, tag = 'scoped memory for tpu_custom_call.1']
    #allocation4 [shape = 's32[2]{0}', space=sflag, size = 0x8, scoped, tag = 'scoped memory for tpu_custom_call.1']
    #allocation5 [shape = 'u8[8192]{0}', space=vmem, size = 0x2000, scoped, tag = 'output window, operand 0']
    %6 = vsyncpa [#allocation3], 0
    %s7 = scalar_lea.sflag [#allocation3], 1
    %8 = vsyncpa %s7, 0
    %9 = vsyncpa [#allocation4], 0
    %s10 = scalar_lea.sflag [#allocation4], 1
    %11 = vsyncpa %s10, 0
    loop: start=0, step=1, limit=4
    $region2: #{tpu_custom_call.1} parent=1 // loop_pre_header
      _
    $region3: #{tpu_custom_call.1} parent=1 // loop_header
      %s13 = sphi 0, %s17
      %p14 = scmp.ge.s32.totalorder %s13, 4
      %s20 = sphi 0, %s32
      %s21 = sphi 0, %s28
      %s22 = sphi 0, %s20
      %s23 = sphi 0, %s21
      %s24 = sphi 0, %s22
      %s25 = sphi 0, %s23
      %s37 = sphi 0, %s39
      %s40 = sphi 0, %s37
      %s41 = sphi 0, %s40
      %s57 = sphi 0, %s41
      %s63 = sphi 0, %s65
      %s66 = sphi 0, %s63
      %s67 = sphi 0, %s66
      %s83 = sphi 0, %s67
    $region4: #{tpu_custom_call.1} parent=1 // loop_header_branch
      %16 = sbr.rel (%p14) target = $region8
    $region5: #{tpu_custom_call.1} parent=1 // loop_body
      %s18 = ssub.s32 %s13, 1
      %s19 = ssub.s32 %s13, 2
      %s26 = sadd.s32 1, %s21
      %p27 = scmp.ge.s32.totalorder %s26, 1
      %s28 = scalar_select %p27, 0, %s26
      %s29 = sadd.s32 1, %s20
      %s30 = scalar_select %p27, %s29, %s20
      %p31 = scmp.ge.s32.totalorder %s30, 2
      %s32 = scalar_select %p31, 0, %s30
      %s33 = ssub.s32 %s20, %s32
      %s34 = ssub.s32 %s21, %s28
      %s35 = sor.u32 %s33, %s34
      %p36 = scmp.eq.s32.totalorder %s35, 0
      %s38 = sadd.s32 %s37, 1
      %s39 = scalar_select %p36, %s37, %s38
      %p42 = pneg %p36
      %p43 = scmp.eq.s32.totalorder %s13, 1
      %p44 = por %p42, %p43
      %p45 = scmp.ne.s32.totalorder %s37, %s40
      %p46 = scmp.eq.s32.totalorder %s13, 0
      %p47 = por %p45, %p46
      %p48 = scmp.ne.s32.totalorder %s37, %s40
      %p49 = scmp.eq.s32.totalorder %s18, 1
      %p50 = por %p48, %p49
      %p51 = scmp.ne.s32.totalorder %s40, %s41
      %p52 = scmp.eq.s32.totalorder %s18, 0
      %p53 = por %p51, %p52
      %p54 = scmp.ne.s32.totalorder %s40, %s41
      %p55 = scmp.eq.s32.totalorder %s19, 1
      %p56 = por %p54, %p55
      %p58 = scmp.ne.s32.totalorder %s41, %s57
      %p59 = scmp.eq.s32.totalorder %s19, 0
      %p60 = por %p58, %p59
      %s61 = ssub.s32 %s20, %s32
      %p62 = scmp.eq.s32.totalorder %s61, 0
      %s64 = sadd.s32 %s63, 1
      %s65 = scalar_select %p62, %s63, %s64
      %p68 = pneg %p62
      %p69 = scmp.eq.s32.totalorder %s13, 1
      %p70 = por %p68, %p69
      %p71 = scmp.ne.s32.totalorder %s63, %s66
      %p72 = scmp.eq.s32.totalorder %s13, 0
      %p73 = por %p71, %p72
      %p74 = scmp.ne.s32.totalorder %s63, %s66
      %p75 = scmp.eq.s32.totalorder %s18, 1
      %p76 = por %p74, %p75
      %p77 = scmp.ne.s32.totalorder %s66, %s67
      %p78 = scmp.eq.s32.totalorder %s18, 0
      %p79 = por %p77, %p78
      %p80 = scmp.ne.s32.totalorder %s66, %s67
      %p81 = scmp.eq.s32.totalorder %s19, 1
      %p82 = por %p80, %p81
      %p84 = scmp.ne.s32.totalorder %s67, %s83
      %p85 = scmp.eq.s32.totalorder %s19, 0
      %p86 = por %p84, %p85
      %p87 = scmp.le.s32.totalorder 1, %s13
      %p88 = scmp.lt.s32.totalorder %s13, 3
      %p89 = pnand %p87, %p88
      %p90 = pneg %p89
      // Predicated region
      $region9: #{tpu_custom_call.1} parent=5 // pred_check
        _
      $region10: #{tpu_custom_call.1} parent=5 // pred_check_branch
        %92 = sbr.rel (%p89) target = $region12
      $region11: #{tpu_custom_call.1} parent=5 // pred_region
        %s93 = ssub.s32 %s13, 1
      $region12: #{tpu_custom_call.1} parent=5 // pred_fallthru
        _
      %p94 = scmp.lt.s32.totalorder %s13, 2
      // Predicated region
      $region13: #{tpu_custom_call.1} parent=5 // pred_check
        %p95 = pneg %p94
      $region14: #{tpu_custom_call.1} parent=5 // pred_check_branch
        %97 = sbr.rel (%p95) target = $region16
      $region15: #{tpu_custom_call.1} parent=5 // pred_region
        // Predicated region
        $region17: #{tpu_custom_call.1} parent=15 // pred_check
          %p98 = pneg %p47
        $region18: #{tpu_custom_call.1} parent=15 // pred_check_branch
          %100 = sbr.rel (%p98) target = $region20
        $region19: #{tpu_custom_call.1} parent=15 // pred_region
          %s101 = sand.u32 %s37, 1
          %s102 = scalar_lea.sflag [#allocation3], %s101
          %s103 = sand.u32 %s37, 1
          %s104 = smul.addr %s103, 8
          %s105 = scalar_lea.vmem [#allocation2], %s104
          %s107 = ssub.s32 128, 128
          %108 = vsyncadd %s102, %s107
          %s109 = sadd.s32 %s21, %s20
          %s110 = smul.addr %s109, 128
          %s111 = scalar_lea.hbm %s0, %s110
          %s113 = sshll.u32 %s105, 4
          %s114 = int_to_ptr.vmem [resolvable:$true] %s113
          %116 = dma.hbm_to_vmem [thread:$0]  %s111, 128, %s114, %s102
        $region20: #{tpu_custom_call.1} parent=15 // pred_fallthru
          _
      $region16: #{tpu_custom_call.1} parent=5 // pred_fallthru
        _
      %p117 = scmp.le.s32.totalorder 1, %s13
      %p118 = scmp.lt.s32.totalorder %s13, 3
      %p119 = pnand %p117, %p118
      %p120 = pneg %p119
      // Predicated region
      $region21: #{tpu_custom_call.1} parent=5 // pred_check
        _
      $region22: #{tpu_custom_call.1} parent=5 // pred_check_branch
        %122 = sbr.rel (%p119) target = $region24
      $region23: #{tpu_custom_call.1} parent=5 // pred_region
        %s123 = ssub.s32 %s13, 1
        %s124 = sand.u32 %s40, 1
        %s125 = scalar_lea.sflag [#allocation3], %s124
        %s126 = sand.u32 %s40, 1
        %s127 = smul.addr %s126, 8
        %s128 = scalar_lea.vmem [#allocation2], %s127
        // Predicated region
        $region25: #{tpu_custom_call.1} parent=23 // pred_check
          %p129 = pneg %p53
        $region26: #{tpu_custom_call.1} parent=23 // pred_check_branch
          %131 = sbr.rel (%p129) target = $region28
        $region27: #{tpu_custom_call.1} parent=23 // pred_region
          %132 = dma.done %s125, 128
        $region28: #{tpu_custom_call.1} parent=23 // pred_fallthru
          _
        %s133 = sand.u32 %s40, 1
        %s134 = scalar_lea.sflag [#allocation3], %s133
        %s135 = sand.u32 %s40, 1
        %s136 = smul.addr %s135, 8
        %s137 = scalar_lea.vmem [#allocation2], %s136
        %p138 = pneg %p53
        %p139 = pneg %p50
        %p140 = pneg %p79
        %p141 = pneg %p76
        %s142 = sand.u32 %s66, 1
        %s143 = scalar_lea.sflag [#allocation4], %s142
        %s144 = sand.u32 %s66, 1
        %s145 = smul.addr %s144, 8
        %s146 = scalar_lea.vmem [#allocation5], %s145
        %p147 = scmp.eq.s32.totalorder %s23, 0
        // Predicated region
        $region29: #{tpu_custom_call.1} parent=23 // pred_check
          %p148 = pneg %p147
        $region30: #{tpu_custom_call.1} parent=23 // pred_check_branch
          %150 = sbr.rel (%p148) target = $region32
        $region31: #{tpu_custom_call.1} parent=23 // pred_region
          %151 = vst [vmem:[%s146] sm:$0xff] 0.0
        $region32: #{tpu_custom_call.1} parent=23 // pred_fallthru
          _
        %v152 = vld [vmem:[%s128] sm:$0xff]
        %v153 = vmul.f32 %v152, %v152
        %v154 = vld [vmem:[%s146] sm:$0xff]
        %v155 = vadd.f32 %v153, 0.0
        %v156 = vadd.f32 %v154, %v155
        %157 = vst [vmem:[%s146] sm:$0xff] %v156
        %s158 = sand.u32 %s66, 1
        %s159 = scalar_lea.sflag [#allocation4], %s158
        %s160 = sand.u32 %s66, 1
        %s161 = smul.addr %s160, 8
        %s162 = scalar_lea.vmem [#allocation5], %s161
        // Predicated region
        $region33: #{tpu_custom_call.1} parent=23 // pred_check
          %p163 = pneg %p76
        $region34: #{tpu_custom_call.1} parent=23 // pred_check_branch
          %165 = sbr.rel (%p163) target = $region36
        $region35: #{tpu_custom_call.1} parent=23 // pred_region
          %s167 = ssub.s32 128, 128
          %168 = vsyncadd %s159, %s167
          %s169 = smul.addr %s22, 128
          %s170 = scalar_lea.hbm %s1, %s169
          %s172 = sshll.u32 %s162, 4
          %s173 = int_to_ptr.vmem [resolvable:$true] %s172
          %175 = dma.vmem_to_hbm [thread:$0]  %s173, 128, %s170, %s159
        $region36: #{tpu_custom_call.1} parent=23 // pred_fallthru
          _
      $region24: #{tpu_custom_call.1} parent=5 // pred_fallthru
        _
      %p176 = scmp.le.s32.totalorder 2, %s13
      // Predicated region
      $region37: #{tpu_custom_call.1} parent=5 // pred_check
        %p177 = pneg %p176
      $region38: #{tpu_custom_call.1} parent=5 // pred_check_branch
        %179 = sbr.rel (%p177) target = $region40
      $region39: #{tpu_custom_call.1} parent=5 // pred_region
        %s180 = ssub.s32 %s13, 2
        // Predicated region
        $region41: #{tpu_custom_call.1} parent=39 // pred_check
          %p181 = pneg %p82
        $region42: #{tpu_custom_call.1} parent=39 // pred_check_branch
          %183 = sbr.rel (%p181) target = $region44
        $region43: #{tpu_custom_call.1} parent=39 // pred_region
          %s184 = sand.u32 %s67, 1
          %s185 = scalar_lea.sflag [#allocation4], %s184
          %s186 = sand.u32 %s67, 1
          %s187 = smul.addr %s186, 8
          %s188 = scalar_lea.vmem [#allocation5], %s187
          %189 = dma.done %s185, 128
        $region44: #{tpu_custom_call.1} parent=39 // pred_fallthru
          _
      $region40: #{tpu_custom_call.1} parent=5 // pred_fallthru
        _
    $region6: #{tpu_custom_call.1} parent=1 // loop_footer
      %s17 = sadd.s32 1, %s13
    $region7: #{tpu_custom_call.1} parent=1 // loop_footer_branch
      %12 = sbr.rel target = $region3
    $region8: #{tpu_custom_call.1} parent=1 // loop_exit
      _
    %190 = vsyncpa [#allocation3], 1
    %s191 = scalar_lea.sflag [#allocation3], 1
    %192 = vsyncpa %s191, 1
    %193 = vsyncpa [#allocation4], 1
    %s194 = scalar_lea.sflag [#allocation4], 1
    %195 = vsyncpa %s194, 1

</llo_original>
